<compile_context>
chip_gen: v7x
topology: tpu7x:2x2x1
jax: 0.10.0
libtpu: 0.0.40
codegen_flags: <defaults>
</compile_context>

<pallas_src>
import math
import functools

import jax
import jax.numpy as jnp
from jax.experimental import pallas as pl
from jax.experimental.pallas import tpu as pltpu

_LANE = 128
_SUBLANE = 8
_F32 = 4  # bytes per float32


def _ru(a: int, b: int) -> int:
    """Round a up to a multiple of b."""
    return ((a + b - 1) // b) * b


def make_p2e_table(max_len: int, d_model: int) -> jnp.ndarray:
    """Deterministic sinusoidal table, identical to the PyTorch __init__."""
    position = jnp.arange(0.0, max_len, dtype=jnp.float32)[:, None]           # (L, 1)
    div_term = jnp.exp(
        jnp.arange(0.0, d_model, 2, dtype=jnp.float32)
        * (-math.log(10000.0) / d_model)
    )                                                                          # (D/2,)
    args = position * div_term                                                 # (L, D/2)
    p2e = jnp.zeros((max_len, d_model), dtype=jnp.float32)
    p2e = p2e.at[:, 0::2].set(jnp.sin(args))
    p2e = p2e.at[:, 1::2].set(jnp.cos(args))
    return p2e


# ----------------------------------------------------------------------------
# Path 1: one-hot MXU gather (table resident in VMEM).
# ----------------------------------------------------------------------------

def _posemb_onehot_kernel(idx_ref, table_ref, out_ref):
    # idx_ref:   (TN, 1)            int32 (VMEM)
    # table_ref: (max_len, d_model) f32   (VMEM; constant index_map -> fetched once)
    # out_ref:   (TN, d_model)      f32   (VMEM)
    idx = idx_ref[...]                                        # (TN, 1)
    tn = idx_ref.shape[0]
    max_len = table_ref.shape[0]
    iota = jax.lax.broadcasted_iota(jnp.int32, (tn, max_len), 1)
    onehot = (iota == idx).astype(table_ref.dtype)            # (TN, max_len) on the VPU
    out_ref[...] = jnp.dot(
        onehot, table_ref[...], preferred_element_type=jnp.float32
    ).astype(out_ref.dtype)


def _onehot_vmem_estimate(tile_n: int, max_len: int, d_model: int) -> int:
    """Rough VMEM footprint (bytes): double-buffered operands + one-hot temp."""
    table = max_len * _ru(d_model, _LANE) * _F32
    idx = _ru(tile_n, _SUBLANE) * _LANE * _F32                # (tile_n, 1) lane-padded
    out = _ru(tile_n, _SUBLANE) * _ru(d_model, _LANE) * _F32
    onehot = _ru(tile_n, _SUBLANE) * _ru(max_len, _LANE) * _F32
    return 2 * table + 2 * idx + 2 * out + onehot


def _posemb_onehot(idx_flat, p2e, max_tile_n: int):
    max_len, d_model = p2e.shape
    n = idx_flat.shape[0]

    # Biggest row tile <= max_tile_n (multiple of 8), but keep >= 2 grid steps when
    # possible so the "parallel" axis can shard across v7x's 2 TensorCores.
    tile_n = min(max_tile_n, max(_SUBLANE, _ru(-(-n // 2), _SUBLANE)))

    # Shrink the tile if the footprint would blow the per-TC VMEM budget (v7x: 64 MiB).
    budget = 40 << 20
    while _onehot_vmem_estimate(tile_n, max_len, d_model) > budget and tile_n > _SUBLANE:
        tile_n = max(_SUBLANE, _ru(tile_n // 2, _SUBLANE))

    n_pad = _ru(n, tile_n)
    idx2d = jnp.zeros((n_pad, 1), dtype=jnp.int32).at[:n, 0].set(idx_flat)

    vmem_limit = min(
        max(_onehot_vmem_estimate(tile_n, max_len, d_model) + (4 << 20), 32 << 20),
        64 << 20,
    )

    out = pl.pallas_call(
        _posemb_onehot_kernel,
        out_shape=jax.ShapeDtypeStruct((n_pad, d_model), jnp.float32),
        grid_spec=pltpu.PrefetchScalarGridSpec(
            num_scalar_prefetch=0,
            grid=(n_pad // tile_n,),
            in_specs=[
                pl.BlockSpec((tile_n, 1), lambda i: (i, 0)),          # index tile
                pl.BlockSpec((max_len, d_model), lambda i: (0, 0)),   # full table, constant
            ],
            out_specs=pl.BlockSpec((tile_n, d_model), lambda i: (i, 0)),
        ),
        compiler_params=pltpu.CompilerParams(
            dimension_semantics=("parallel",),
            vmem_limit_bytes=vmem_limit,
        ),
    )(idx2d, p2e)
    return out[:n]


# ----------------------------------------------------------------------------
# Path 2: scalar-prefetch row gather (large max_len — table rows DMA'd on demand).
# ----------------------------------------------------------------------------

def _posemb_row_gather_kernel(idx_ref, row_ref, out_ref):
    # idx_ref lives in SMEM (scalar prefetch) and is consumed by the index maps only;
    # the body is a pure copy of the selected table row.
    del idx_ref
    out_ref[...] = row_ref[...]


def _posemb_row_gather(idx_flat, p2e):
    max_len, d_model = p2e.shape
    n = idx_flat.shape[0]
    # View each table row as its own (1, d_model) page so block == full last-two dims.
    table3 = p2e.reshape(max_len, 1, d_model)

    out = pl.pallas_call(
        _posemb_row_gather_kernel,
        out_shape=jax.ShapeDtypeStruct((n, 1, d_model), jnp.float32),
        grid_spec=pltpu.PrefetchScalarGridSpec(
            num_scalar_prefetch=1,                # idx_flat -> SMEM, feeds the index maps
            grid=(n,),
            in_specs=[
                pl.BlockSpec((1, 1, d_model), lambda i, idx: (idx[i], 0, 0)),
            ],
            out_specs=pl.BlockSpec((1, 1, d_model), lambda i, idx: (i, 0, 0)),
        ),
        compiler_params=pltpu.CompilerParams(
            dimension_semantics=("arbitrary",),
        ),
    )(idx_flat, table3)
    return out.reshape(n, d_model)


# ----------------------------------------------------------------------------
# Public wrapper (== PositionalEmbedding.forward).
# ----------------------------------------------------------------------------

@functools.partial(jax.jit, static_argnames=("max_tile_n", "force_gather"))
def positional_embedding(x, p2e, *, max_tile_n: int = 512, force_gather: bool = False):
    """x: integer tensor (any shape), values in [0, max_len). Returns x.shape + (d_model,)."""
    max_len, d_model = p2e.shape
    shp = x.shape
    idx_flat = x.reshape(-1).astype(jnp.int32)

    # Big tables don't belong in VMEM (two pipeline buffers of the table must fit next to
    # everything else; v7x has only 64 MiB/TC) -> use the scalar-prefetch row gather.
    table_buf_bytes = 2 * max_len * _ru(d_model, _LANE) * _F32
    use_gather = force_gather or table_buf_bytes > (24 << 20)

    if use_gather:
        flat = _posemb_row_gather(idx_flat, p2e)
    else:
        flat = _posemb_onehot(idx_flat, p2e, max_tile_n)
    return flat.reshape(shp + (d_model,))


if __name__ == "__main__":
    # Small config consistent with the module: max_len=64, d_model=32.
    max_len, d_model = 64, 32
    batch, seq = 2, 8

    p2e = make_p2e_table(max_len, d_model)

    key = jax.random.PRNGKey(0)
    key_a, key_b = jax.random.split(key)
    x = jax.random.randint(key_a, (batch, seq), minval=0, maxval=max_len, dtype=jnp.int32)

    ref = jnp.take(p2e, x.reshape(-1), axis=0).reshape(x.shape + (d_model,))

    # Path 1: one-hot MXU gather (default for small tables).
    emb = jax.block_until_ready(positional_embedding(x, p2e))
    assert emb.shape == (batch, seq, d_model)
    assert emb.dtype == jnp.float32
    assert jnp.allclose(emb, ref, atol=1e-6), "one-hot path mismatch vs reference gather"

    # Path 2: scalar-prefetch row gather (large-max_len fallback), forced here to verify.
    emb_g = jax.block_until_ready(positional_embedding(x, p2e, force_gather=True))
    assert jnp.allclose(emb_g, ref, atol=1e-6), "row-gather path mismatch vs reference"

    # A second (still small) shape that exercises padding and a multi-step grid.
    x2 = jax.random.randint(key_b, (5, 120), minval=0, maxval=max_len, dtype=jnp.int32)
    ref2 = jnp.take(p2e, x2.reshape(-1), axis=0).reshape(x2.shape + (d_model,))
    emb2 = jax.block_until_ready(positional_embedding(x2, p2e))
    assert jnp.allclose(emb2, ref2, atol=1e-6), "multi-tile one-hot path mismatch"

    print("KERNEL_OK")
</pallas_src>

<mosaic_0001>
module attributes {stable_mosaic.version = 11 : i64} {
  func.func @_posemb_onehot_kernel(%arg0: i32, %arg1: memref<8x1xi32, #tpu.memory_space<vmem>>, %arg2: memref<64x32xf32, #tpu.memory_space<vmem>>, %arg3: memref<8x32xf32, #tpu.memory_space<vmem>>) attributes {dimension_semantics = [#tpu.dimension_semantics<parallel>], iteration_bounds = array<i64: 2>, scalar_prefetch = 0 : i64, scratch_operands = 0 : i64, tpu.core_type = #tpu.core_type<tc>, window_params = [{transform_indices = @transform_0, window_bounds = array<i64: 8, 1>}, {pipeline_mode = #tpu.pipeline_mode<synchronous>, transform_indices = @transform_1, window_bounds = array<i64: 64, 32>}, {transform_indices = @transform_2, window_bounds = array<i64: 8, 32>}]} {
    %c0 = arith.constant 0 : index
    %c0_0 = arith.constant 0 : index
    %0 = vector.load %arg1[%c0, %c0_0] : memref<8x1xi32, #tpu.memory_space<vmem>>, vector<8x1xi32>
    %1 = tpu.iota {dimensions = array<i32: 1>} : vector<8x64xi32>
    %2 = vector.broadcast %0 : vector<8x1xi32> to vector<8x64xi32>
    %3 = arith.cmpi eq, %1, %2 : vector<8x64xi32>
    %4 = arith.extui %3 : vector<8x64xi1> to vector<8x64xi32>
    %5 = arith.sitofp %4 : vector<8x64xi32> to vector<8x64xf32>
    %c0_1 = arith.constant 0 : index
    %c0_2 = arith.constant 0 : index
    %6 = vector.load %arg2[%c0_1, %c0_2] : memref<64x32xf32, #tpu.memory_space<vmem>>, vector<64x32xf32>
    %cst = arith.constant dense<0.000000e+00> : vector<8x32xf32>
    %7 = tpu.matmul %5, %6, %cst {dimension_numbers = #tpu.dot_dimension_numbers<[1], [0], [0], [1], [0, 0, 1, 1], [], []>} : vector<8x64xf32>, vector<64x32xf32>, vector<8x32xf32> -> vector<8x32xf32>
    %c0_3 = arith.constant 0 : index
    %c0_4 = arith.constant 0 : index
    %8 = vector.load %arg3[%c0_3, %c0_4] : memref<8x32xf32, #tpu.memory_space<vmem>>, vector<8x32xf32>
    tpu.vector_store %arg3[%c0_3, %c0_4], %7 {strides = array<i32>} : memref<8x32xf32, #tpu.memory_space<vmem>>, vector<8x32xf32>,
    return
  }
  func.func @transform_0(%arg0: i32) -> (i32, i32) {
    %c0_i32 = arith.constant 0 : i32
    %c0_i32_0 = arith.constant 0 : i32
    return %arg0, %c0_i32 : i32, i32
  }
  func.func @transform_1(%arg0: i32) -> (i32, i32) {
    %c0_i32 = arith.constant 0 : i32
    %c0_i32_0 = arith.constant 0 : i32
    %c0_i32_1 = arith.constant 0 : i32
    return %c0_i32, %c0_i32_0 : i32, i32
  }
  func.func @transform_2(%arg0: i32) -> (i32, i32) {
    %c0_i32 = arith.constant 0 : i32
    %c0_i32_0 = arith.constant 0 : i32
    return %arg0, %c0_i32 : i32, i32
  }
}

</mosaic_0001>

<llo_original>
// kernel: positional_embedding.1
$region0: #{positional_embedding.1}
  #allocation0 [shape = 'u32[]', space=smem, size = 0x4, offset = 0x4, fixed_abs, tag = 'smem constant byte address 0x4 - core index']
  #allocation1 [shape = 'u32[144,128]{1,0:T(1,128)}', space=vmem, size = 0x12000, scoped, tag = 'internal scratch']
  %s0 = inlined_call_operand.vmem [shape: s32[16,1], index: 0, kind: input, shape index: {}]
  %s1 = inlined_call_operand.vmem [shape: f32[64,32], index: 1, kind: input, shape index: {}]
  %s2 = inlined_call_operand.hbm [shape: f32[16,32], index: 2, kind: output, shape index: {}]
  %s3 = sld [smem:[#allocation0]]
  $region41: #{positional_embedding.1} parent=0
    _
  %s5 = ssub.s32 1, %s3
  %s6 = scalar_select 0, %s5, %s3
  $region1: #{positional_embedding.1} parent=0
    #allocation2 [shape = 'u8[8192]{0}', space=vmem, size = 0x2000, scoped, tag = 'output window, operand 0']
    #allocation3 [shape = 's32[2]{0}', space=sflag, size = 0x8, scoped, tag = 'scoped memory for positional_embedding.1']
    %7 = vsyncpa [#allocation3], 0
    %s8 = scalar_lea.sflag [#allocation3], 1
    %9 = vsyncpa %s8, 0
    loop: start=0, step=1, limit=4
    $region2: #{positional_embedding.1} parent=1 // loop_pre_header
      _
    $region3: #{positional_embedding.1} parent=1 // loop_header
      %s11 = sphi 0, %s15
      %p12 = scmp.ge.s32.totalorder %s11, 4
      %s21 = sphi 0, %s23
      %s24 = sphi 0, %s21
      %s25 = sphi 0, %s24
      %s41 = sphi 0, %s25
      %s45 = sphi 0, %s45
      %s47 = sphi 0, %s45
      %s48 = sphi 0, %s47
      %s62 = sphi 0, %s48
      %s68 = sphi 0, %s70
      %s71 = sphi 0, %s68
      %s72 = sphi 0, %s71
      %s88 = sphi 0, %s72
    $region4: #{positional_embedding.1} parent=1 // loop_header_branch
      %14 = sbr.rel (%p12) target = $region8
    $region5: #{positional_embedding.1} parent=1 // loop_body
      %s16 = ssub.s32 %s11, 1
      %s17 = ssub.s32 %s11, 2
      %s18 = sadd.s32 %s11, 1
      %s19 = ssub.s32 %s11, %s18
      %p20 = scmp.eq.s32.totalorder %s19, 0
      %s22 = sadd.s32 %s21, 1
      %s23 = scalar_select %p20, %s21, %s22
      %p26 = pneg %p20
      %p27 = scmp.eq.s32.totalorder %s11, 1
      %p28 = por %p26, %p27
      %p29 = scmp.ne.s32.totalorder %s21, %s24
      %p30 = scmp.eq.s32.totalorder %s11, 0
      %p31 = por %p29, %p30
      %p32 = scmp.ne.s32.totalorder %s21, %s24
      %p33 = scmp.eq.s32.totalorder %s16, 1
      %p34 = por %p32, %p33
      %p35 = scmp.ne.s32.totalorder %s24, %s25
      %p36 = scmp.eq.s32.totalorder %s16, 0
      %p37 = por %p35, %p36
      %p38 = scmp.ne.s32.totalorder %s24, %s25
      %p39 = scmp.eq.s32.totalorder %s17, 1
      %p40 = por %p38, %p39
      %p42 = scmp.ne.s32.totalorder %s25, %s41
      %p43 = scmp.eq.s32.totalorder %s17, 0
      %p44 = por %p42, %p43
      %s46 = sadd.s32 %s45, 1
      %p49 = scmp.eq.s32.totalorder %s11, 1
      %p50 = scmp.ne.s32.totalorder %s45, %s47
      %p51 = scmp.eq.s32.totalorder %s11, 0
      %p52 = por %p50, %p51
      %p53 = scmp.ne.s32.totalorder %s45, %s47
      %p54 = scmp.eq.s32.totalorder %s16, 1
      %p55 = por %p53, %p54
      %p56 = scmp.ne.s32.totalorder %s47, %s48
      %p57 = scmp.eq.s32.totalorder %s16, 0
      %p58 = por %p56, %p57
      %p59 = scmp.ne.s32.totalorder %s47, %s48
      %p60 = scmp.eq.s32.totalorder %s17, 1
      %p61 = por %p59, %p60
      %p63 = scmp.ne.s32.totalorder %s48, %s62
      %p64 = scmp.eq.s32.totalorder %s17, 0
      %p65 = por %p63, %p64
      %s66 = ssub.s32 %s11, %s18
      %p67 = scmp.eq.s32.totalorder %s66, 0
      %s69 = sadd.s32 %s68, 1
      %s70 = scalar_select %p67, %s68, %s69
      %p73 = pneg %p67
      %p74 = scmp.eq.s32.totalorder %s11, 1
      %p75 = por %p73, %p74
      %p76 = scmp.ne.s32.totalorder %s68, %s71
      %p77 = scmp.eq.s32.totalorder %s11, 0
      %p78 = por %p76, %p77
      %p79 = scmp.ne.s32.totalorder %s68, %s71
      %p80 = scmp.eq.s32.totalorder %s16, 1
      %p81 = por %p79, %p80
      %p82 = scmp.ne.s32.totalorder %s71, %s72
      %p83 = scmp.eq.s32.totalorder %s16, 0
      %p84 = por %p82, %p83
      %p85 = scmp.ne.s32.totalorder %s71, %s72
      %p86 = scmp.eq.s32.totalorder %s17, 1
      %p87 = por %p85, %p86
      %p89 = scmp.ne.s32.totalorder %s72, %s88
      %p90 = scmp.eq.s32.totalorder %s17, 0
      %p91 = por %p89, %p90
      %p92 = scmp.le.s32.totalorder 1, %s11
      %p93 = scmp.lt.s32.totalorder %s11, 3
      %p94 = pnand %p92, %p93
      %p95 = pneg %p94
      // Predicated region
      $region9: #{positional_embedding.1} parent=5 // pred_check
        _
      $region10: #{positional_embedding.1} parent=5 // pred_check_branch
        %97 = sbr.rel (%p94) target = $region12
      $region11: #{positional_embedding.1} parent=5 // pred_region
        %s98 = ssub.s32 %s11, 1
        // Predicated region
        $region13: #{positional_embedding.1} parent=11 // pred_check
          %p99 = pneg %p58
        $region14: #{positional_embedding.1} parent=11 // pred_check_branch
          %101 = sbr.rel (%p99) target = $region16
        $region15: #{positional_embedding.1} parent=11 // pred_region
          _
        $region16: #{positional_embedding.1} parent=11 // pred_fallthru
          _
      $region12: #{positional_embedding.1} parent=5 // pred_fallthru
        _
      %p102 = scmp.lt.s32.totalorder %s11, 2
      // Predicated region
      $region17: #{positional_embedding.1} parent=5 // pred_check
        %p103 = pneg %p102
      $region18: #{positional_embedding.1} parent=5 // pred_check_branch
        %105 = sbr.rel (%p103) target = $region20
      $region19: #{positional_embedding.1} parent=5 // pred_region
        // Predicated region
        $region21: #{positional_embedding.1} parent=19 // pred_check
          %p106 = pneg %p31
        $region22: #{positional_embedding.1} parent=19 // pred_check_branch
          %108 = sbr.rel (%p106) target = $region24
        $region23: #{positional_embedding.1} parent=19 // pred_region
          %p109 = scmp.lt.s32.totalorder %s11, 1
          %s110 = scalar_select %p109, %s11, 1
          %s111 = smul.addr %s110, 8
          %s112 = scalar_lea.vmem %s0, %s111
        $region24: #{positional_embedding.1} parent=19 // pred_fallthru
          _
      $region20: #{positional_embedding.1} parent=5 // pred_fallthru
        _
      %p113 = scmp.le.s32.totalorder 1, %s11
      %p114 = scmp.lt.s32.totalorder %s11, 3
      %p115 = pnand %p113, %p114
      %p116 = pneg %p115
      // Predicated region
      $region25: #{positional_embedding.1} parent=5 // pred_check
        _
      $region26: #{positional_embedding.1} parent=5 // pred_check_branch
        %118 = sbr.rel (%p115) target = $region28
      $region27: #{positional_embedding.1} parent=5 // pred_region
        %s119 = ssub.s32 %s11, 1
        %p120 = scmp.lt.s32.totalorder %s16, 1
        %s121 = scalar_select %p120, %s16, 1
        %s122 = smul.addr %s121, 8
        %s123 = scalar_lea.vmem %s0, %s122
        %p124 = pneg %p37
        %p125 = pneg %p34
        %p126 = pneg %p58
        %p127 = pneg %p55
        %p128 = pneg %p84
        %p129 = pneg %p81
        %s130 = sand.u32 %s71, 1
        %s131 = scalar_lea.sflag [#allocation3], %s130
        %s132 = sand.u32 %s71, 1
        %s133 = smul.addr %s132, 8
        %s134 = scalar_lea.vmem [#allocation2], %s133
        %p135 = scmp.lt.s32.totalorder %s16, 1
        %s136 = scalar_select %p135, %s16, 1
        %s137 = smul.addr %s136, 8
        %s138 = scalar_lea.vmem %s0, %s137
        %v139 = vld [vmem:[%s138] sm:$0xff]
        %v140 = vlaneseq
        %v141 = vand.u32 %v140, 127
        %142 = vset.pattern.permute.xlu0 0
        %143 = vperm.xlu0 %142, %v139
        %v144 = vpop.permute.xlu0 %143
        %vm145 = vcmp.eq.s32.totalorder %v141, %v144
        %v146 = vsel %vm145, 1, 0
        %v147 = vcvt.s32.f32 %v146
        %v148 = vld [vmem:[%s1] sm:$0xff]
        %v149 = vld [vmem:[%s1 + $0x8] sm:$0xff]
        %v150 = vld [vmem:[%s1 + $0x10] sm:$0xff]
        %v151 = vld [vmem:[%s1 + $0x18] sm:$0xff]
        %v152 = vld [vmem:[%s1 + $0x20] sm:$0xff]
        %v153 = vld [vmem:[%s1 + $0x28] sm:$0xff]
        %v154 = vld [vmem:[%s1 + $0x30] sm:$0xff]
        %v155 = vld [vmem:[%s1 + $0x38] sm:$0xff]
        %vm156 = vcmask 523264
        %v158 = vsel %vm156, %v147, 0
        %160 = vmatprep.subr.mxu0 0.0
        %161 = vmatpush1.msra.mxu0 %v148
        %162 = vmatprep.subr.mxu0 0.0
        %163 = vmatpush1.msra.mxu0 %v149
        %164 = vmatprep.subr.mxu0 0.0
        %165 = vmatpush1.msra.mxu0 %v150
        %166 = vmatprep.subr.mxu0 0.0
        %167 = vmatpush1.msra.mxu0 %v151
        %168 = vmatprep.subr.mxu0 0.0
        %169 = vmatpush1.msra.mxu0 %v152
        %170 = vmatprep.subr.mxu0 0.0
        %171 = vmatpush1.msra.mxu0 %v153
        %172 = vmatprep.subr.mxu0 0.0
        %173 = vmatpush1.msra.mxu0 %v154
        %174 = vmatprep.subr.mxu0 0.0
        %175 = vmatpush1.msra.mxu0 %v155
        %176 = vmatprep.subr.mxu0 0.0
        %177 = vmatpush1.msra.mxu0 0.0
        %178 = vmatprep.subr.mxu0 0.0
        %179 = vmatpush1.msra.mxu0 0.0
        %180 = vmatprep.subr.mxu0 0.0
        %181 = vmatpush1.msra.mxu0 0.0
        %182 = vmatprep.subr.mxu0 0.0
        %183 = vmatpush1.msra.mxu0 0.0
        %184 = vmatprep.subr.mxu0 0.0
        %185 = vmatpush1.msra.mxu0 0.0
        %186 = vmatprep.subr.mxu0 0.0
        %187 = vmatpush1.msra.mxu0 0.0
        %188 = vmatprep.subr.mxu0 0.0
        %189 = vmatpush1.msra.mxu0 0.0
        %190 = vmatprep.subr.mxu0 0.0
        %191 = vmatpush1.msra.mxu0 0.0
        %192 = vmatprep.subr.mxu0 0.0
        %193 = vmatpush1.msra.mxu0 0.0
        %194 = vmatprep.subr.mxu0 0.0
        %195 = vmatpush1.msra.mxu0 0.0
        %196 = vmatprep.subr.mxu0 0.0
        %197 = vmatpush1.msra.mxu0 0.0
        %198 = vmatprep.subr.mxu0 0.0
        %199 = vmatpush1.msra.mxu0 0.0
        %200 = vmatprep.subr.mxu0 0.0
        %201 = vmatpush1.msra.mxu0 0.0
        %202 = vmatprep.subr.mxu0 0.0
        %203 = vmatpush1.msra.mxu0 0.0
        %204 = vmatprep.subr.mxu0 0.0
        %205 = vmatpush1.msra.mxu0 0.0
        %206 = vmatprep.subr.mxu0 0.0
        %207 = vmatpush1.msra.mxu0 0.0
        %208 = vmatprep.subr.mxu0 0.0
        %209 = vmatpush1.msra.mxu0 0.0
        %210 = vmatprep.subr.mxu0 0.0
        %211 = vmatpush1.msra.mxu0 0.0
        %212 = vmatprep.subr.mxu0 0.0
        %213 = vmatpush1.msra.mxu0 0.0
        %214 = vmatprep.subr.mxu0 0.0
        %215 = vmatpush1.msra.mxu0 0.0
        %216 = vmatprep.subr.mxu0 0.0
        %217 = vmatpush1.msra.mxu0 0.0
        %218 = vmatprep.subr.mxu0 0.0
        %219 = vmatpush1.msra.mxu0 0.0
        %220 = vmatprep.subr.mxu0 0.0
        %221 = vmatpush1.msra.mxu0 0.0
        %222 = vmatprep.subr.mxu0 0.0
        %223 = vmatpush1.msra.mxu0 0.0
        %224 = vmatprep.mubr.f32.mxu0 0.0
        %225 = vmatmul.mubr.f32.gmra.mrb[0].mxu0 %v158
        %v226 = vpop.f32.mrb[0].mxu0
        %v227 = vadd.f32 0.0, %v226
        %v228 = vpop.f32.mrb[0].mxu0
        %229 = vdwg.mxu0
        %vm230 = vcmask 261120
        %231 = vst.msk [vmem:[%s134] sm:$0xff] %vm230, %v227
        %s232 = sand.u32 %s71, 1
        %s233 = scalar_lea.sflag [#allocation3], %s232
        %s234 = sand.u32 %s71, 1
        %s235 = smul.addr %s234, 8
        %s236 = scalar_lea.vmem [#allocation2], %s235
        // Predicated region
        $region29: #{positional_embedding.1} parent=27 // pred_check
          %p237 = pneg %p81
        $region30: #{positional_embedding.1} parent=27 // pred_check_branch
          %239 = sbr.rel (%p237) target = $region32
        $region31: #{positional_embedding.1} parent=27 // pred_region
          %s241 = ssub.s32 128, 128
          %242 = vsyncadd %s233, %s241
          %s243 = smul.addr %s16, 128
          %s244 = scalar_lea.hbm %s2, %s243
          %s246 = sshll.u32 %s236, 4
          %s247 = int_to_ptr.vmem [resolvable:$true] %s246
          %249 = dma.vmem_to_hbm [thread:$0]  %s247, 128, %s244, %s233
        $region32: #{positional_embedding.1} parent=27 // pred_fallthru
          _
      $region28: #{positional_embedding.1} parent=5 // pred_fallthru
        _
      %p250 = scmp.le.s32.totalorder 2, %s11
      // Predicated region
      $region33: #{positional_embedding.1} parent=5 // pred_check
        %p251 = pneg %p250
      $region34: #{positional_embedding.1} parent=5 // pred_check_branch
        %253 = sbr.rel (%p251) target = $region36
      $region35: #{positional_embedding.1} parent=5 // pred_region
        %s254 = ssub.s32 %s11, 2
        // Predicated region
        $region37: #{positional_embedding.1} parent=35 // pred_check
          %p255 = pneg %p87
        $region38: #{positional_embedding.1} parent=35 // pred_check_branch
          %257 = sbr.rel (%p255) target = $region40
        $region39: #{positional_embedding.1} parent=35 // pred_region
          %s258 = sand.u32 %s72, 1
          %s259 = scalar_lea.sflag [#allocation3], %s258
          %s260 = sand.u32 %s72, 1
          %s261 = smul.addr %s260, 8
          %s262 = scalar_lea.vmem [#allocation2], %s261
          %263 = dma.done %s259, 128
        $region40: #{positional_embedding.1} parent=35 // pred_fallthru
          _
      $region36: #{positional_embedding.1} parent=5 // pred_fallthru
        _
    $region6: #{positional_embedding.1} parent=1 // loop_footer
      %s15 = sadd.s32 1, %s11
    $region7: #{positional_embedding.1} parent=1 // loop_footer_branch
      %10 = sbr.rel target = $region3
    $region8: #{positional_embedding.1} parent=1 // loop_exit
      _
    %264 = vsyncpa [#allocation3], 1
    %s265 = scalar_lea.sflag [#allocation3], 1
    %266 = vsyncpa %s265, 1

</llo_original>
